<compile_context>
chip_gen: v7x
topology: tpu7x:2x2x1
jax: 0.10.0
libtpu: 0.0.40
codegen_flags: <defaults>
</compile_context>

<pallas_src>
import functools

import jax
import jax.numpy as jnp
from jax.experimental import pallas as pl
from jax.experimental.pallas import tpu as pltpu


_VMEM_BLOCK_BUDGET = 12 * 1024 * 1024   # target bytes per input block (input dtype)
_VMEM_LIMIT_BYTES = 48 * 1024 * 1024    # scoped VMEM limit (< v7x 64 MiB physical)
_MIN_PARALLEL_STEPS = 4                 # >= 2 * TCs (v7x) on the "parallel" axis


def _prob_kernel(x_ref, prob_ref, acc_ref, *, h_chunk, w):
    """x_ref: (bc_tile, h_chunk*w) input-dtype block (lane-dense).
    prob_ref: (bc_tile, w) output block (resident across the H-chunk axis).
    acc_ref:  (bc_tile, w) float32 accumulator scratch."""
    hj = pl.program_id(1)

    @pl.when(hj == 0)
    def _init():
        acc_ref[...] = jnp.zeros_like(acc_ref)

    if h_chunk <= 64:
        # Short fixed trip count: fully unrolled static slices.
        acc = acc_ref[...]
        for h in range(h_chunk):
            xh = x_ref[:, h * w:(h + 1) * w].astype(jnp.float32)
            acc = acc + xh * xh
        acc_ref[...] = acc
    else:
        def body(h, acc):
            start = pl.multiple_of(h * w, w)
            xh = x_ref[:, pl.ds(start, w)].astype(jnp.float32)
            return acc + xh * xh
        acc_ref[...] = jax.lax.fori_loop(0, h_chunk, body, acc_ref[...])

    @pl.when(hj == pl.num_programs(1) - 1)
    def _finalize():
        prob_ref[...] = jnp.sqrt(acc_ref[...]).astype(prob_ref.dtype)


def _choose_tiles(bc, h, w, itemsize):
    """Pick (bc_tile, h_chunk) for the input viewed as (BC, H*W).

    Invariants: h_chunk divides H; when h_chunk < H the block's last dim
    (h_chunk*W) is a multiple of 128; bc_tile is a multiple of 8 (or == BC
    when BC < 8); a block of `min(8, BC)` rows always fits the budget when an
    admissible H divisor exists."""
    min_rows = bc if bc < 8 else 8

    # 1) H chunk: keep whole H unless even `min_rows` full rows blow the budget.
    h_chunk = h
    if min_rows * h * w * itemsize > _VMEM_BLOCK_BUDGET:
        for cand in range(h - 1, 0, -1):
            if h % cand:
                continue
            if (cand * w) % 128:            # lane-aligned block last dim
                continue
            if min_rows * cand * w * itemsize <= _VMEM_BLOCK_BUDGET:
                h_chunk = cand
                break
        # TODO(synk): if no aligned divisor of H exists (huge prime H) we keep
        # h_chunk = H and rely on the raised vmem limit; pathological only.

    chunk_bytes = max(1, h_chunk * w * itemsize)

    # 2) BC tile: largest multiple of 8 fitting the budget, capped so the
    #    parallel axis has >= _MIN_PARALLEL_STEPS steps when BC allows (v7x).
    max_rows = max(min_rows, _VMEM_BLOCK_BUDGET // chunk_bytes)
    target = -(-bc // _MIN_PARALLEL_STEPS)          # cdiv(bc, steps)
    bc_tile = min(bc, max_rows, max(target, 8))
    if bc >= 8:
        bc_tile = max(8, (bc_tile // 8) * 8)
    else:
        bc_tile = bc
    return bc_tile, h_chunk


def probability_layer(x: jnp.ndarray):
    """Returns (output, probability) matching the PyTorch module:
       output is `x` itself (passthrough, no copy),
       probability == sqrt(sum(x**2, dim=2)) with shape (B, C, W)."""
    B, C, H, W = x.shape
    BC = B * C
    itemsize = jnp.dtype(x.dtype).itemsize

    xr = x.reshape(BC, H * W)               # contiguous, lane-dense view

    bc_tile, h_chunk = _choose_tiles(BC, H, W, itemsize)
    grid = (pl.cdiv(BC, bc_tile), H // h_chunk)

    kernel = functools.partial(_prob_kernel, h_chunk=h_chunk, w=W)

    prob2d = pl.pallas_call(
        kernel,
        out_shape=jax.ShapeDtypeStruct((BC, W), x.dtype),
        grid=grid,
        in_specs=[pl.BlockSpec((bc_tile, h_chunk * W), lambda i, j: (i, j))],
        out_specs=pl.BlockSpec((bc_tile, W), lambda i, j: (i, 0)),
        scratch_shapes=[pltpu.VMEM((bc_tile, W), jnp.float32)],
        compiler_params=pltpu.CompilerParams(
            dimension_semantics=("parallel", "arbitrary"),
            vmem_limit_bytes=_VMEM_LIMIT_BYTES,
        ),
        cost_estimate=pl.CostEstimate(
            flops=2 * BC * H * W,
            transcendentals=BC * W,
            bytes_accessed=BC * H * W * itemsize + BC * W * itemsize,
        ),
    )(xr)

    # TODO(synk): the PyTorch module stores `probability` as a module attribute
    # (a side effect); here it is returned as a second output instead.
    return x, prob2d.reshape(B, C, W)


if __name__ == "__main__":
    key = jax.random.PRNGKey(0)
    # small NCHW input consistent with the module's use of dim=2
    x = jax.random.normal(key, (2, 4, 16, 16), dtype=jnp.float32)

    y, prob = probability_layer(x)
    y = jax.block_until_ready(y)
    prob = jax.block_until_ready(prob)

    # reference check
    prob_ref = jnp.sqrt(jnp.sum(x * x, axis=2))
    assert y.shape == x.shape
    assert prob.shape == (2, 4, 16)
    assert jnp.allclose(y, x), "passthrough mismatch"
    assert jnp.allclose(prob, prob_ref, atol=1e-5, rtol=1e-5), "probability mismatch"

    print("KERNEL_OK")
</pallas_src>

<mosaic_0001>
module attributes {stable_mosaic.version = 11 : i64} {
  func.func @_prob_kernel(%arg0: i32, %arg1: i32, %arg2: memref<8x256xf32, #tpu.memory_space<vmem>>, %arg3: memref<8x16xf32, #tpu.memory_space<vmem>>, %arg4: memref<8x16xf32, #tpu.memory_space<vmem>>) attributes {dimension_semantics = [#tpu.dimension_semantics<parallel>, #tpu.dimension_semantics<arbitrary>], iteration_bounds = array<i64: 1, 1>, scalar_prefetch = 0 : i64, scratch_operands = 1 : i64, tpu.core_type = #tpu.core_type<tc>, window_params = [{transform_indices = @transform_0, window_bounds = array<i64: 8, 256>}, {transform_indices = @transform_1, window_bounds = array<i64: 8, 16>}]} {
    %c0_i32 = arith.constant 0 : i32
    %0 = arith.cmpi eq, %arg1, %c0_i32 : i32
    %1 = arith.extui %0 : i1 to i32
    %c0_i32_0 = arith.constant 0 : i32
    %2 = arith.cmpi ne, %1, %c0_i32_0 : i32
    scf.if %2 {
      %cst = arith.constant 0.000000e+00 : f32
      %56 = vector.broadcast %cst : f32 to vector<8x16xf32>
      %c0_23 = arith.constant 0 : index
      %c0_24 = arith.constant 0 : index
      %57 = vector.load %arg4[%c0_23, %c0_24] : memref<8x16xf32, #tpu.memory_space<vmem>>, vector<8x16xf32>
      tpu.vector_store %arg4[%c0_23, %c0_24], %56 {strides = array<i32>} : memref<8x16xf32, #tpu.memory_space<vmem>>, vector<8x16xf32>,
    } else {
    }
    %c0 = arith.constant 0 : index
    %c0_1 = arith.constant 0 : index
    %3 = vector.load %arg4[%c0, %c0_1] : memref<8x16xf32, #tpu.memory_space<vmem>>, vector<8x16xf32>
    %c0_2 = arith.constant 0 : index
    %c0_3 = arith.constant 0 : index
    %4 = vector.load %arg2[%c0_2, %c0_3] : memref<8x256xf32, #tpu.memory_space<vmem>>, vector<8x16xf32>
    %5 = arith.mulf %4, %4 : vector<8x16xf32>
    %6 = arith.addf %3, %5 : vector<8x16xf32>
    %c0_4 = arith.constant 0 : index
    %c16 = arith.constant 16 : index
    %7 = vector.load %arg2[%c0_4, %c16] : memref<8x256xf32, #tpu.memory_space<vmem>>, vector<8x16xf32>
    %8 = arith.mulf %7, %7 : vector<8x16xf32>
    %9 = arith.addf %6, %8 : vector<8x16xf32>
    %c0_5 = arith.constant 0 : index
    %c32 = arith.constant 32 : index
    %10 = vector.load %arg2[%c0_5, %c32] : memref<8x256xf32, #tpu.memory_space<vmem>>, vector<8x16xf32>
    %11 = arith.mulf %10, %10 : vector<8x16xf32>
    %12 = arith.addf %9, %11 : vector<8x16xf32>
    %c0_6 = arith.constant 0 : index
    %c48 = arith.constant 48 : index
    %13 = vector.load %arg2[%c0_6, %c48] : memref<8x256xf32, #tpu.memory_space<vmem>>, vector<8x16xf32>
    %14 = arith.mulf %13, %13 : vector<8x16xf32>
    %15 = arith.addf %12, %14 : vector<8x16xf32>
    %c0_7 = arith.constant 0 : index
    %c64 = arith.constant 64 : index
    %16 = vector.load %arg2[%c0_7, %c64] : memref<8x256xf32, #tpu.memory_space<vmem>>, vector<8x16xf32>
    %17 = arith.mulf %16, %16 : vector<8x16xf32>
    %18 = arith.addf %15, %17 : vector<8x16xf32>
    %c0_8 = arith.constant 0 : index
    %c80 = arith.constant 80 : index
    %19 = vector.load %arg2[%c0_8, %c80] : memref<8x256xf32, #tpu.memory_space<vmem>>, vector<8x16xf32>
    %20 = arith.mulf %19, %19 : vector<8x16xf32>
    %21 = arith.addf %18, %20 : vector<8x16xf32>
    %c0_9 = arith.constant 0 : index
    %c96 = arith.constant 96 : index
    %22 = vector.load %arg2[%c0_9, %c96] : memref<8x256xf32, #tpu.memory_space<vmem>>, vector<8x16xf32>
    %23 = arith.mulf %22, %22 : vector<8x16xf32>
    %24 = arith.addf %21, %23 : vector<8x16xf32>
    %c0_10 = arith.constant 0 : index
    %c112 = arith.constant 112 : index
    %25 = vector.load %arg2[%c0_10, %c112] : memref<8x256xf32, #tpu.memory_space<vmem>>, vector<8x16xf32>
    %26 = arith.mulf %25, %25 : vector<8x16xf32>
    %27 = arith.addf %24, %26 : vector<8x16xf32>
    %c0_11 = arith.constant 0 : index
    %c128 = arith.constant 128 : index
    %28 = vector.load %arg2[%c0_11, %c128] : memref<8x256xf32, #tpu.memory_space<vmem>>, vector<8x16xf32>
    %29 = arith.mulf %28, %28 : vector<8x16xf32>
    %30 = arith.addf %27, %29 : vector<8x16xf32>
    %c0_12 = arith.constant 0 : index
    %c144 = arith.constant 144 : index
    %31 = vector.load %arg2[%c0_12, %c144] : memref<8x256xf32, #tpu.memory_space<vmem>>, vector<8x16xf32>
    %32 = arith.mulf %31, %31 : vector<8x16xf32>
    %33 = arith.addf %30, %32 : vector<8x16xf32>
    %c0_13 = arith.constant 0 : index
    %c160 = arith.constant 160 : index
    %34 = vector.load %arg2[%c0_13, %c160] : memref<8x256xf32, #tpu.memory_space<vmem>>, vector<8x16xf32>
    %35 = arith.mulf %34, %34 : vector<8x16xf32>
    %36 = arith.addf %33, %35 : vector<8x16xf32>
    %c0_14 = arith.constant 0 : index
    %c176 = arith.constant 176 : index
    %37 = vector.load %arg2[%c0_14, %c176] : memref<8x256xf32, #tpu.memory_space<vmem>>, vector<8x16xf32>
    %38 = arith.mulf %37, %37 : vector<8x16xf32>
    %39 = arith.addf %36, %38 : vector<8x16xf32>
    %c0_15 = arith.constant 0 : index
    %c192 = arith.constant 192 : index
    %40 = vector.load %arg2[%c0_15, %c192] : memref<8x256xf32, #tpu.memory_space<vmem>>, vector<8x16xf32>
    %41 = arith.mulf %40, %40 : vector<8x16xf32>
    %42 = arith.addf %39, %41 : vector<8x16xf32>
    %c0_16 = arith.constant 0 : index
    %c208 = arith.constant 208 : index
    %43 = vector.load %arg2[%c0_16, %c208] : memref<8x256xf32, #tpu.memory_space<vmem>>, vector<8x16xf32>
    %44 = arith.mulf %43, %43 : vector<8x16xf32>
    %45 = arith.addf %42, %44 : vector<8x16xf32>
    %c0_17 = arith.constant 0 : index
    %c224 = arith.constant 224 : index
    %46 = vector.load %arg2[%c0_17, %c224] : memref<8x256xf32, #tpu.memory_space<vmem>>, vector<8x16xf32>
    %47 = arith.mulf %46, %46 : vector<8x16xf32>
    %48 = arith.addf %45, %47 : vector<8x16xf32>
    %c0_18 = arith.constant 0 : index
    %c240 = arith.constant 240 : index
    %49 = vector.load %arg2[%c0_18, %c240] : memref<8x256xf32, #tpu.memory_space<vmem>>, vector<8x16xf32>
    %50 = arith.mulf %49, %49 : vector<8x16xf32>
    %51 = arith.addf %48, %50 : vector<8x16xf32>
    %c0_19 = arith.constant 0 : index
    %c0_20 = arith.constant 0 : index
    %52 = vector.load %arg4[%c0_19, %c0_20] : memref<8x16xf32, #tpu.memory_space<vmem>>, vector<8x16xf32>
    tpu.vector_store %arg4[%c0_19, %c0_20], %51 {strides = array<i32>} : memref<8x16xf32, #tpu.memory_space<vmem>>, vector<8x16xf32>,
    %c0_i32_21 = arith.constant 0 : i32
    %53 = arith.cmpi eq, %arg1, %c0_i32_21 : i32
    %54 = arith.extui %53 : i1 to i32
    %c0_i32_22 = arith.constant 0 : i32
    %55 = arith.cmpi ne, %54, %c0_i32_22 : i32
    scf.if %55 {
      %c0_23 = arith.constant 0 : index
      %c0_24 = arith.constant 0 : index
      %56 = vector.load %arg4[%c0_23, %c0_24] : memref<8x16xf32, #tpu.memory_space<vmem>>, vector<8x16xf32>
      %57 = math.sqrt %56 : vector<8x16xf32>
      %c0_25 = arith.constant 0 : index
      %c0_26 = arith.constant 0 : index
      %58 = vector.load %arg3[%c0_25, %c0_26] : memref<8x16xf32, #tpu.memory_space<vmem>>, vector<8x16xf32>
      tpu.vector_store %arg3[%c0_25, %c0_26], %57 {strides = array<i32>} : memref<8x16xf32, #tpu.memory_space<vmem>>, vector<8x16xf32>,
    } else {
    }
    return
  }
  func.func @transform_0(%arg0: i32, %arg1: i32) -> (i32, i32) {
    %c0_i32 = arith.constant 0 : i32
    return %arg0, %arg1 : i32, i32
  }
  func.func @transform_1(%arg0: i32, %arg1: i32) -> (i32, i32) {
    %c0_i32 = arith.constant 0 : i32
    %c0_i32_0 = arith.constant 0 : i32
    return %arg0, %c0_i32 : i32, i32
  }
}

</mosaic_0001>

<llo_original>
// kernel: tpu_custom_call.1
$region0: #{tpu_custom_call.1}
  #allocation0 [shape = 'u32[]', space=smem, size = 0x4, offset = 0x4, fixed_abs, tag = 'smem constant byte address 0x4 - core index']
  #allocation1 [shape = 'u32[144,128]{1,0:T(1,128)}', space=vmem, size = 0x12000, scoped, tag = 'internal scratch']
  #allocation2 [shape = 'f32[8,16]{1,0:T(8,128)}', space=vmem, size = 0x1000, scoped, tag = 'scratch operand']
  %s0 = inlined_call_operand.hbm [shape: f32[8,256], index: 0, kind: input, shape index: {}]
  %s1 = inlined_call_operand.hbm [shape: f32[8,16], index: 1, kind: output, shape index: {}]
  %s2 = sld [smem:[#allocation0]]
  $region26: #{tpu_custom_call.1} parent=0
    _
  %s4 = ssub.s32 1, %s2
  %s5 = scalar_select 0, %s4, %s2
  $region1: #{tpu_custom_call.1} parent=0
    #allocation3 [shape = 'u8[8192]{0}', space=vmem, size = 0x2000, scoped, tag = 'input window, operand 0, single buffered']
    #allocation4 [shape = 's32[1]{0}', space=sflag, size = 0x4, scoped, tag = 'scoped memory for tpu_custom_call.1']
    #allocation5 [shape = 's32[1]{0}', space=sflag, size = 0x4, scoped, tag = 'scoped memory for tpu_custom_call.1']
    #allocation6 [shape = 'u8[4096]{0}', space=vmem, size = 0x1000, scoped, tag = 'output window, operand 0, single buffered']
    %6 = vsyncpa [#allocation4], 0
    %7 = vsyncpa [#allocation5], 0
    // Predicated region
    $region2: #{tpu_custom_call.1} parent=1 // pred_check
      _
    $region3: #{tpu_custom_call.1} parent=1 // pred_check_branch
      %9 = sbr.rel (0) target = $region5
    $region4: #{tpu_custom_call.1} parent=1 // pred_region
      %s11 = ssub.s32 256, 256
      %12 = vsyncadd [#allocation4], %s11
      %s14 = sshll.u32 [#allocation3], 4
      %s15 = int_to_ptr.vmem [resolvable:$true] %s14
      %17 = dma.hbm_to_vmem [thread:$0]  %s0, 256, %s15, [#allocation4]
    $region5: #{tpu_custom_call.1} parent=1 // pred_fallthru
      _
    // Predicated region
    $region6: #{tpu_custom_call.1} parent=1 // pred_check
      _
    $region7: #{tpu_custom_call.1} parent=1 // pred_check_branch
      %19 = sbr.rel (0) target = $region9
    $region8: #{tpu_custom_call.1} parent=1 // pred_region
      %20 = dma.done [#allocation4], 256
    $region9: #{tpu_custom_call.1} parent=1 // pred_fallthru
      _
    %p21 = scmp.eq.s32.totalorder 0, 0
    // Predicated region
    $region10: #{tpu_custom_call.1} parent=1 // pred_check
      %p22 = pneg %p21
    $region11: #{tpu_custom_call.1} parent=1 // pred_check_branch
      %24 = sbr.rel (%p22) target = $region13
    $region12: #{tpu_custom_call.1} parent=1 // pred_region
      %vm25 = vcmask 130048
      %26 = vst.msk [vmem:[#allocation2] sm:$0xff] %vm25, 0.0
    $region13: #{tpu_custom_call.1} parent=1 // pred_fallthru
      _
    %v27 = vld [vmem:[#allocation2] sm:$0xff]
    %v28 = vld [vmem:[#allocation3] sm:$0xff]
    %v29 = vmul.f32 %v28, %v28
    %v30 = vadd.f32 %v27, %v29
    %32 = vrot.lane.b32.xlu0 %v29, 112
    %v33 = vpop.permute.xlu0 %32
    %v35 = vadd.f32 %v30, %v33
    %36 = vrot.lane.b32.xlu0 %v29, 96
    %v37 = vpop.permute.xlu0 %36
    %v39 = vadd.f32 %v35, %v37
    %40 = vrot.lane.b32.xlu0 %v29, 80
    %v41 = vpop.permute.xlu0 %40
    %v43 = vadd.f32 %v39, %v41
    %44 = vrot.lane.b32.xlu0 %v29, 64
    %v45 = vpop.permute.xlu0 %44
    %v47 = vadd.f32 %v43, %v45
    %48 = vrot.lane.b32.xlu0 %v29, 48
    %v49 = vpop.permute.xlu0 %48
    %v51 = vadd.f32 %v47, %v49
    %52 = vrot.lane.b32.xlu0 %v29, 32
    %v53 = vpop.permute.xlu0 %52
    %v55 = vadd.f32 %v51, %v53
    %56 = vrot.lane.b32.xlu0 %v29, 16
    %v57 = vpop.permute.xlu0 %56
    %v59 = vadd.f32 %v55, %v57
    %v60 = vld [vmem:[#allocation3 + $0x8] sm:$0xff]
    %v61 = vmul.f32 %v60, %v60
    %v62 = vadd.f32 %v59, %v61
    %64 = vrot.lane.b32.xlu0 %v61, 112
    %v65 = vpop.permute.xlu0 %64
    %v67 = vadd.f32 %v62, %v65
    %68 = vrot.lane.b32.xlu0 %v61, 96
    %v69 = vpop.permute.xlu0 %68
    %v71 = vadd.f32 %v67, %v69
    %72 = vrot.lane.b32.xlu0 %v61, 80
    %v73 = vpop.permute.xlu0 %72
    %v75 = vadd.f32 %v71, %v73
    %76 = vrot.lane.b32.xlu0 %v61, 64
    %v77 = vpop.permute.xlu0 %76
    %v79 = vadd.f32 %v75, %v77
    %80 = vrot.lane.b32.xlu0 %v61, 48
    %v81 = vpop.permute.xlu0 %80
    %v83 = vadd.f32 %v79, %v81
    %84 = vrot.lane.b32.xlu0 %v61, 32
    %v85 = vpop.permute.xlu0 %84
    %v87 = vadd.f32 %v83, %v85
    %88 = vrot.lane.b32.xlu0 %v61, 16
    %v89 = vpop.permute.xlu0 %88
    %v91 = vadd.f32 %v87, %v89
    %vm92 = vcmask 130048
    %93 = vst.msk [vmem:[#allocation2] sm:$0xff] %vm92, %v91
    // Predicated region
    $region14: #{tpu_custom_call.1} parent=1 // pred_check
      %p94 = pneg %p21
    $region15: #{tpu_custom_call.1} parent=1 // pred_check_branch
      %96 = sbr.rel (%p94) target = $region17
    $region16: #{tpu_custom_call.1} parent=1 // pred_region
      %v97 = vld [vmem:[#allocation2] sm:$0xff]
      %v98 = vrsqrt.pop %v97
      %v99 = vmul.f32 %v97, %v98
      %vm100 = vcmp.eq.f32.partialorder %v97, inf
      %v101 = vsel %vm100, %v97, %v99
      %vm102 = vcmp.eq.f32.partialorder %v97, 0.0
      %v103 = vand.u32 %v97, 2147483648
      %v104 = vsel %vm102, %v103, %v101
      %105 = vst.msk [vmem:[#allocation6] sm:$0xff] %vm92, %v104
    $region17: #{tpu_custom_call.1} parent=1 // pred_fallthru
      _
    // Predicated region
    $region18: #{tpu_custom_call.1} parent=1 // pred_check
      _
    $region19: #{tpu_custom_call.1} parent=1 // pred_check_branch
      %107 = sbr.rel (0) target = $region21
    $region20: #{tpu_custom_call.1} parent=1 // pred_region
      %s109 = ssub.s32 128, 128
      %110 = vsyncadd [#allocation5], %s109
      %s112 = sshll.u32 [#allocation6], 4
      %s113 = int_to_ptr.vmem [resolvable:$true] %s112
      %115 = dma.vmem_to_hbm [thread:$0]  %s113, 128, %s1, [#allocation5]
    $region21: #{tpu_custom_call.1} parent=1 // pred_fallthru
      _
    // Predicated region
    $region22: #{tpu_custom_call.1} parent=1 // pred_check
      _
    $region23: #{tpu_custom_call.1} parent=1 // pred_check_branch
      %117 = sbr.rel (0) target = $region25
    $region24: #{tpu_custom_call.1} parent=1 // pred_region
      %118 = dma.done [#allocation5], 128
    $region25: #{tpu_custom_call.1} parent=1 // pred_fallthru
      _
    %119 = vsyncpa [#allocation4], 1
    %120 = vsyncpa [#allocation5], 1

</llo_original>
